<compile_context>
chip_gen: v7x
topology: tpu7x:2x2x1
jax: 0.10.0
libtpu: 0.0.40
codegen_flags: <defaults>
</compile_context>

<pallas_src>
import functools

import jax
import jax.numpy as jnp
from jax.experimental import pallas as pl
from jax.experimental.pallas import tpu as pltpu


def classifier1_kernel(x_ref, w1_ref, p_ref, y_ref, out_ref, *, h2_dim,
                       num_classes):
    batch = x_ref.shape[0]
    h1_dim = w1_ref.shape[1]

    # Packed-slab row layout (lanes zero-padded to 128):
    #   rows [0, h1_dim)                 : w2   (h1_dim, h2_dim)
    #   rows [h1_dim, h1_dim + h2_dim)   : w3   (h2_dim, num_classes)
    #   rows h1_dim + h2_dim + {0,1,2}   : b1, b2, b3
    w3_r0 = h1_dim
    b_r0 = h1_dim + h2_dim

    x = x_ref[...]
    b1 = p_ref[b_r0:b_r0 + 1, 0:h1_dim]                    # (1, 64)
    b2_row = p_ref[b_r0 + 1:b_r0 + 2, :]                   # (1, 128) zero-padded
    b3 = p_ref[b_r0 + 2:b_r0 + 3, 0:num_classes]           # (1, C)

    # lin1 + relu (MXU).
    h1 = jnp.dot(x, w1_ref[...], preferred_element_type=jnp.float32) + b1
    h1 = jnp.maximum(h1, 0.0)
    # F.dropout(p=0.5, training=False) -> identity (eval mode).
    # TODO(synk): training-mode dropout would use pltpu.prng_seed / prng_random_bits.

    # lin2 + relu (MXU) at full 128-lane width: slab lanes >= h2_dim are zero
    # and bias/relu keep them zero, so no narrow loads / relayouts are needed.
    w2_full = p_ref[0:h1_dim, :]                            # (64, 128)
    h2 = jnp.dot(h1, w2_full, preferred_element_type=jnp.float32) + b2_row
    h2 = jnp.maximum(h2, 0.0)                               # (B, 128), lanes>=8 zero
    # F.dropout(p=0.5, training=False) -> identity (eval mode).

    # lin3 on the VPU: (B,8)@(8,C) is far too small to pay MXU push/pop
    # latency; accumulate with h2_dim unrolled broadcast multiply-adds.
    w3_blk = p_ref[w3_r0:w3_r0 + h2_dim, :]                 # (8, 128)
    logits = jnp.broadcast_to(b3, (batch, num_classes))
    for k in range(h2_dim):                                 # static unroll (== 8)
        logits = logits + h2[:, k:k + 1] * w3_blk[k:k + 1, 0:num_classes]

    # Numerically stable log_softmax along classes.
    m = jnp.max(logits, axis=-1, keepdims=True)
    shifted = logits - m
    logp = shifted - jnp.log(jnp.sum(jnp.exp(shifted), axis=-1, keepdims=True))

    # NLL loss (mean over batch); one-hot mask built in-kernel from int labels.
    lane = jax.lax.broadcasted_iota(jnp.int32, (batch, num_classes), 1)
    onehot = (lane == y_ref[...]).astype(jnp.float32)                   # (B, C)
    per_sample = -jnp.sum(onehot * logp, axis=-1, keepdims=True)        # (B, 1)
    loss = jnp.sum(per_sample, axis=0, keepdims=True) * (1.0 / batch)   # (1, 1)

    # argmax over classes (first-max tie-break -> matches jnp.argmax / torch).
    lane_f = lane.astype(jnp.float32)
    pred_f = jnp.min(jnp.where(logits == m, lane_f, float(num_classes)),
                     axis=-1, keepdims=True)                            # (B, 1)

    # Single f32 output slab: lanes [0:C) = raw logits, lane C = loss,
    # lane C+1 = argmax (exact small ints in f32; cast back outside).
    out_ref[:, 0:num_classes] = logits
    out_ref[:, num_classes:num_classes + 1] = jnp.broadcast_to(loss, (batch, 1))
    out_ref[:, num_classes + 1:num_classes + 2] = pred_f


@functools.partial(jax.jit, static_argnames=("h2_dim", "num_classes"))
def classifier1_forward(x, y, w1, pslab, *, h2_dim, num_classes):
    """Fused forward: returns (loss, pred, logits) like Classifier1.forward
    (eval mode, args.imbalance=False)."""
    batch = x.shape[0]
    y2d = y.reshape(batch, 1).astype(jnp.int32)

    kernel = functools.partial(classifier1_kernel, h2_dim=h2_dim,
                               num_classes=num_classes)
    vmem = lambda: pl.BlockSpec(memory_space=pltpu.MemorySpace.VMEM)

    slab = pl.pallas_call(
        kernel,
        out_shape=jax.ShapeDtypeStruct((batch, num_classes + 2), jnp.float32),
        in_specs=[vmem(), vmem(), vmem(), vmem()],
        out_specs=vmem(),
        # NOTE: for a large batch, add grid=(pl.cdiv(batch, TILE_B),) with
        # row-tiled BlockSpecs on x / out and
        # compiler_params=pltpu.CompilerParams(dimension_semantics=("parallel",))
        # so both v7x TensorCores get used; the packed params (<90 KiB total)
        # stay un-tiled.
    )(x, w1, pslab, y2d)

    logits = slab[:, :num_classes]
    loss = slab[0, num_classes]
    pred = slab[:, num_classes + 1].astype(jnp.int32)
    return loss, pred, logits


def init_linear(key, fan_in, fan_out):
    """Deterministic init matching torch.nn.Linear.reset_parameters bounds:
    U(-1/sqrt(fan_in), 1/sqrt(fan_in)). Weight returned pre-transposed."""
    kw, kb = jax.random.split(key)
    bound = 1.0 / jnp.sqrt(float(fan_in))
    w = jax.random.uniform(kw, (fan_in, fan_out), jnp.float32, -bound, bound)
    b = jax.random.uniform(kb, (1, fan_out), jnp.float32, -bound, bound)
    return w, b


def pack_params(w2, w3, b1, b2, b3, lanes=128):
    """Pack lin2/lin3 weights and all three biases into one (rows, 128) f32
    slab (done once at init) so the kernel needs a single DMA for everything
    but x, w1 and the labels."""
    h1_dim, h2_dim = w2.shape
    num_classes = w3.shape[1]
    rows = h1_dim + h2_dim + 3
    rows_pad = ((rows + 7) // 8) * 8
    slab = jnp.zeros((rows_pad, lanes), jnp.float32)
    slab = slab.at[0:h1_dim, 0:h2_dim].set(w2)
    slab = slab.at[h1_dim:h1_dim + h2_dim, 0:num_classes].set(w3)
    slab = slab.at[h1_dim + h2_dim, 0:h1_dim].set(b1.reshape(-1))
    slab = slab.at[h1_dim + h2_dim + 1, 0:h2_dim].set(b2.reshape(-1))
    slab = slab.at[h1_dim + h2_dim + 2, 0:num_classes].set(b3.reshape(-1))
    return slab


if __name__ == "__main__":
    nhid = 32
    num_classes = 4
    batch = 8
    in_features = nhid * 6          # 192
    h1_features = nhid * 2          # 64
    h2_features = nhid // 4         # 8

    key = jax.random.PRNGKey(0)
    k1, k2, k3, kx, ky = jax.random.split(key, 5)

    w1, b1 = init_linear(k1, in_features, h1_features)
    w2, b2 = init_linear(k2, h1_features, h2_features)
    w3, b3 = init_linear(k3, h2_features, num_classes)
    pslab = pack_params(w2, w3, b1, b2, b3)

    x = jax.random.normal(kx, (batch, in_features), jnp.float32)
    y = jax.random.randint(ky, (batch,), 0, num_classes, jnp.int32)

    loss, pred, logits = classifier1_forward(x, y, w1, pslab,
                                             h2_dim=h2_features,
                                             num_classes=num_classes)
    jax.block_until_ready((loss, pred, logits))

    # Lightweight sanity check against a pure-JAX reference.
    h1r = jnp.maximum(x @ w1 + b1, 0.0)
    h2r = jnp.maximum(h1r @ w2 + b2, 0.0)
    logits_ref = h2r @ w3 + b3
    logp_ref = jax.nn.log_softmax(logits_ref, axis=-1)
    loss_ref = -jnp.mean(logp_ref[jnp.arange(batch), y])
    assert jnp.allclose(logits, logits_ref, atol=5e-5, rtol=5e-4)
    assert jnp.allclose(loss, loss_ref, atol=5e-5, rtol=5e-4)
    assert jnp.array_equal(pred, jnp.argmax(logits_ref, axis=1))

    print("KERNEL_OK")
</pallas_src>

<mosaic_0001>
module attributes {stable_mosaic.version = 11 : i64} {
  func.func @classifier1_kernel(%arg0: memref<8x192xf32, #tpu.memory_space<vmem>>, %arg1: memref<192x64xf32, #tpu.memory_space<vmem>>, %arg2: memref<80x128xf32, #tpu.memory_space<vmem>>, %arg3: memref<8x1xi32, #tpu.memory_space<vmem>>, %arg4: memref<8x6xf32, #tpu.memory_space<vmem>>) attributes {dimension_semantics = [], scalar_prefetch = 0 : i64, scratch_operands = 0 : i64, tpu.core_type = #tpu.core_type<tc>} {
    %c0 = arith.constant 0 : index
    %c0_0 = arith.constant 0 : index
    %0 = vector.load %arg0[%c0, %c0_0] : memref<8x192xf32, #tpu.memory_space<vmem>>, vector<8x192xf32>
    %c72 = arith.constant 72 : index
    %c0_1 = arith.constant 0 : index
    %1 = vector.load %arg2[%c72, %c0_1] : memref<80x128xf32, #tpu.memory_space<vmem>>, vector<1x64xf32>
    %c73 = arith.constant 73 : index
    %c0_2 = arith.constant 0 : index
    %2 = vector.load %arg2[%c73, %c0_2] : memref<80x128xf32, #tpu.memory_space<vmem>>, vector<1x128xf32>
    %c74 = arith.constant 74 : index
    %c0_3 = arith.constant 0 : index
    %3 = vector.load %arg2[%c74, %c0_3] : memref<80x128xf32, #tpu.memory_space<vmem>>, vector<1x4xf32>
    %c0_4 = arith.constant 0 : index
    %c0_5 = arith.constant 0 : index
    %4 = vector.load %arg1[%c0_4, %c0_5] : memref<192x64xf32, #tpu.memory_space<vmem>>, vector<192x64xf32>
    %cst = arith.constant dense<0.000000e+00> : vector<8x64xf32>
    %5 = tpu.matmul %0, %4, %cst {dimension_numbers = #tpu.dot_dimension_numbers<[1], [0], [0], [1], [0, 0, 1, 1], [], []>} : vector<8x192xf32>, vector<192x64xf32>, vector<8x64xf32> -> vector<8x64xf32>
    %6 = vector.broadcast %1 : vector<1x64xf32> to vector<8x64xf32>
    %7 = arith.addf %5, %6 : vector<8x64xf32>
    %cst_6 = arith.constant 0.000000e+00 : f32
    %8 = vector.broadcast %cst_6 : f32 to vector<8x64xf32>
    %9 = arith.maximumf %7, %8 : vector<8x64xf32>
    %c0_7 = arith.constant 0 : index
    %c0_8 = arith.constant 0 : index
    %10 = vector.load %arg2[%c0_7, %c0_8] : memref<80x128xf32, #tpu.memory_space<vmem>>, vector<64x128xf32>
    %cst_9 = arith.constant dense<0.000000e+00> : vector<8x128xf32>
    %11 = tpu.matmul %9, %10, %cst_9 {dimension_numbers = #tpu.dot_dimension_numbers<[1], [0], [0], [1], [0, 0, 1, 1], [], []>} : vector<8x64xf32>, vector<64x128xf32>, vector<8x128xf32> -> vector<8x128xf32>
    %12 = vector.broadcast %2 : vector<1x128xf32> to vector<8x128xf32>
    %13 = arith.addf %11, %12 : vector<8x128xf32>
    %cst_10 = arith.constant 0.000000e+00 : f32
    %14 = vector.broadcast %cst_10 : f32 to vector<8x128xf32>
    %15 = arith.maximumf %13, %14 : vector<8x128xf32>
    %c64 = arith.constant 64 : index
    %c0_11 = arith.constant 0 : index
    %16 = vector.load %arg2[%c64, %c0_11] : memref<80x128xf32, #tpu.memory_space<vmem>>, vector<8x128xf32>
    %17 = vector.shape_cast %3 : vector<1x4xf32> to vector<1x4xf32>
    %18 = vector.broadcast %17 : vector<1x4xf32> to vector<8x4xf32>
    %19 = vector.extract_strided_slice %15 {offsets = [0, 0], sizes = [8, 1], strides = [1, 1]} : vector<8x128xf32> to vector<8x1xf32>
    %20 = vector.extract_strided_slice %16 {offsets = [0, 0], sizes = [1, 4], strides = [1, 1]} : vector<8x128xf32> to vector<1x4xf32>
    %21 = vector.broadcast %19 : vector<8x1xf32> to vector<8x4xf32>
    %22 = vector.broadcast %20 : vector<1x4xf32> to vector<8x4xf32>
    %23 = arith.mulf %21, %22 : vector<8x4xf32>
    %24 = arith.addf %18, %23 : vector<8x4xf32>
    %25 = vector.extract_strided_slice %15 {offsets = [0, 1], sizes = [8, 1], strides = [1, 1]} : vector<8x128xf32> to vector<8x1xf32>
    %26 = vector.extract_strided_slice %16 {offsets = [1, 0], sizes = [1, 4], strides = [1, 1]} : vector<8x128xf32> to vector<1x4xf32>
    %27 = vector.broadcast %25 : vector<8x1xf32> to vector<8x4xf32>
    %28 = vector.broadcast %26 : vector<1x4xf32> to vector<8x4xf32>
    %29 = arith.mulf %27, %28 : vector<8x4xf32>
    %30 = arith.addf %24, %29 : vector<8x4xf32>
    %31 = vector.extract_strided_slice %15 {offsets = [0, 2], sizes = [8, 1], strides = [1, 1]} : vector<8x128xf32> to vector<8x1xf32>
    %32 = vector.extract_strided_slice %16 {offsets = [2, 0], sizes = [1, 4], strides = [1, 1]} : vector<8x128xf32> to vector<1x4xf32>
    %33 = vector.broadcast %31 : vector<8x1xf32> to vector<8x4xf32>
    %34 = vector.broadcast %32 : vector<1x4xf32> to vector<8x4xf32>
    %35 = arith.mulf %33, %34 : vector<8x4xf32>
    %36 = arith.addf %30, %35 : vector<8x4xf32>
    %37 = vector.extract_strided_slice %15 {offsets = [0, 3], sizes = [8, 1], strides = [1, 1]} : vector<8x128xf32> to vector<8x1xf32>
    %38 = vector.extract_strided_slice %16 {offsets = [3, 0], sizes = [1, 4], strides = [1, 1]} : vector<8x128xf32> to vector<1x4xf32>
    %39 = vector.broadcast %37 : vector<8x1xf32> to vector<8x4xf32>
    %40 = vector.broadcast %38 : vector<1x4xf32> to vector<8x4xf32>
    %41 = arith.mulf %39, %40 : vector<8x4xf32>
    %42 = arith.addf %36, %41 : vector<8x4xf32>
    %43 = vector.extract_strided_slice %15 {offsets = [0, 4], sizes = [8, 1], strides = [1, 1]} : vector<8x128xf32> to vector<8x1xf32>
    %44 = vector.extract_strided_slice %16 {offsets = [4, 0], sizes = [1, 4], strides = [1, 1]} : vector<8x128xf32> to vector<1x4xf32>
    %45 = vector.broadcast %43 : vector<8x1xf32> to vector<8x4xf32>
    %46 = vector.broadcast %44 : vector<1x4xf32> to vector<8x4xf32>
    %47 = arith.mulf %45, %46 : vector<8x4xf32>
    %48 = arith.addf %42, %47 : vector<8x4xf32>
    %49 = vector.extract_strided_slice %15 {offsets = [0, 5], sizes = [8, 1], strides = [1, 1]} : vector<8x128xf32> to vector<8x1xf32>
    %50 = vector.extract_strided_slice %16 {offsets = [5, 0], sizes = [1, 4], strides = [1, 1]} : vector<8x128xf32> to vector<1x4xf32>
    %51 = vector.broadcast %49 : vector<8x1xf32> to vector<8x4xf32>
    %52 = vector.broadcast %50 : vector<1x4xf32> to vector<8x4xf32>
    %53 = arith.mulf %51, %52 : vector<8x4xf32>
    %54 = arith.addf %48, %53 : vector<8x4xf32>
    %55 = vector.extract_strided_slice %15 {offsets = [0, 6], sizes = [8, 1], strides = [1, 1]} : vector<8x128xf32> to vector<8x1xf32>
    %56 = vector.extract_strided_slice %16 {offsets = [6, 0], sizes = [1, 4], strides = [1, 1]} : vector<8x128xf32> to vector<1x4xf32>
    %57 = vector.broadcast %55 : vector<8x1xf32> to vector<8x4xf32>
    %58 = vector.broadcast %56 : vector<1x4xf32> to vector<8x4xf32>
    %59 = arith.mulf %57, %58 : vector<8x4xf32>
    %60 = arith.addf %54, %59 : vector<8x4xf32>
    %61 = vector.extract_strided_slice %15 {offsets = [0, 7], sizes = [8, 1], strides = [1, 1]} : vector<8x128xf32> to vector<8x1xf32>
    %62 = vector.extract_strided_slice %16 {offsets = [7, 0], sizes = [1, 4], strides = [1, 1]} : vector<8x128xf32> to vector<1x4xf32>
    %63 = vector.broadcast %61 : vector<8x1xf32> to vector<8x4xf32>
    %64 = vector.broadcast %62 : vector<1x4xf32> to vector<8x4xf32>
    %65 = arith.mulf %63, %64 : vector<8x4xf32>
    %66 = arith.addf %60, %65 : vector<8x4xf32>
    %cst_12 = arith.constant dense<0xFF800000> : vector<8xf32>
    %67 = vector.multi_reduction <maximumf>, %66, %cst_12 [1] : vector<8x4xf32> to vector<8xf32>
    %68 = vector.shape_cast %67 : vector<8xf32> to vector<8x1xf32>
    %69 = vector.broadcast %68 : vector<8x1xf32> to vector<8x4xf32>
    %70 = arith.subf %66, %69 : vector<8x4xf32>
    %71 = math.exp %70 : vector<8x4xf32>
    %cst_13 = arith.constant dense<0.000000e+00> : vector<8xf32>
    %72 = vector.multi_reduction <add>, %71, %cst_13 [1] : vector<8x4xf32> to vector<8xf32>
    %73 = vector.shape_cast %72 : vector<8xf32> to vector<8x1xf32>
    %74 = math.log %73 : vector<8x1xf32>
    %75 = vector.broadcast %74 : vector<8x1xf32> to vector<8x4xf32>
    %76 = arith.subf %70, %75 : vector<8x4xf32>
    %77 = tpu.iota {dimensions = array<i32: 1>} : vector<8x4xi32>
    %c0_14 = arith.constant 0 : index
    %c0_15 = arith.constant 0 : index
    %78 = vector.load %arg3[%c0_14, %c0_15] : memref<8x1xi32, #tpu.memory_space<vmem>>, vector<8x1xi32>
    %79 = vector.broadcast %78 : vector<8x1xi32> to vector<8x4xi32>
    %80 = arith.cmpi eq, %77, %79 : vector<8x4xi32>
    %81 = arith.extui %80 : vector<8x4xi1> to vector<8x4xi32>
    %82 = arith.sitofp %81 : vector<8x4xi32> to vector<8x4xf32>
    %83 = arith.mulf %82, %76 : vector<8x4xf32>
    %cst_16 = arith.constant dense<0.000000e+00> : vector<8xf32>
    %84 = vector.multi_reduction <add>, %83, %cst_16 [1] : vector<8x4xf32> to vector<8xf32>
    %85 = vector.shape_cast %84 : vector<8xf32> to vector<8x1xf32>
    %cst_17 = arith.constant 0.000000e+00 : f32
    %86 = vector.broadcast %cst_17 : f32 to vector<8x1xf32>
    %87 = arith.subf %86, %85 : vector<8x1xf32>
    %cst_18 = arith.constant dense<0.000000e+00> : vector<1xf32>
    %88 = vector.multi_reduction <add>, %87, %cst_18 [0] : vector<8x1xf32> to vector<1xf32>
    %89 = vector.shape_cast %88 : vector<1xf32> to vector<1x1xf32>
    %cst_19 = arith.constant 1.250000e-01 : f32
    %90 = vector.broadcast %cst_19 : f32 to vector<1x1xf32>
    %91 = arith.mulf %89, %90 : vector<1x1xf32>
    %92 = arith.sitofp %77 : vector<8x4xi32> to vector<8x4xf32>
    %93 = vector.broadcast %68 : vector<8x1xf32> to vector<8x4xf32>
    %94 = arith.cmpf oeq, %66, %93 : vector<8x4xf32>
    %cst_20 = arith.constant 4.000000e+00 : f32
    %95 = vector.broadcast %cst_20 : f32 to vector<8x4xf32>
    %96 = arith.select %94, %92, %95 : vector<8x4xi1>, vector<8x4xf32>
    %cst_21 = arith.constant dense<0x7F800000> : vector<8xf32>
    %97 = vector.multi_reduction <minimumf>, %96, %cst_21 [1] : vector<8x4xf32> to vector<8xf32>
    %98 = vector.shape_cast %97 : vector<8xf32> to vector<8x1xf32>
    %c0_22 = arith.constant 0 : index
    %c0_23 = arith.constant 0 : index
    %99 = vector.load %arg4[%c0_22, %c0_23] : memref<8x6xf32, #tpu.memory_space<vmem>>, vector<8x4xf32>
    tpu.vector_store %arg4[%c0_22, %c0_23], %66 {strides = array<i32>} : memref<8x6xf32, #tpu.memory_space<vmem>>, vector<8x4xf32>,
    %100 = vector.shape_cast %91 : vector<1x1xf32> to vector<1x1xf32>
    %101 = vector.broadcast %100 : vector<1x1xf32> to vector<8x1xf32>
    %c0_24 = arith.constant 0 : index
    %c4 = arith.constant 4 : index
    %102 = vector.load %arg4[%c0_24, %c4] : memref<8x6xf32, #tpu.memory_space<vmem>>, vector<8x1xf32>
    tpu.vector_store %arg4[%c0_24, %c4], %101 {strides = array<i32>} : memref<8x6xf32, #tpu.memory_space<vmem>>, vector<8x1xf32>,
    %c0_25 = arith.constant 0 : index
    %c5 = arith.constant 5 : index
    %103 = vector.load %arg4[%c0_25, %c5] : memref<8x6xf32, #tpu.memory_space<vmem>>, vector<8x1xf32>
    tpu.vector_store %arg4[%c0_25, %c5], %98 {strides = array<i32>} : memref<8x6xf32, #tpu.memory_space<vmem>>, vector<8x1xf32>,
    return
  }
}

</mosaic_0001>

<llo_original>
// kernel: classifier1_forward.1
$region0: #{classifier1_forward.1}
  #allocation0 [shape = 'u32[]', space=smem, size = 0x4, offset = 0x4, fixed_abs, tag = 'smem constant byte address 0x4 - core index']
  #allocation1 [shape = 'u32[144,128]{1,0:T(1,128)}', space=vmem, size = 0x12000, scoped, tag = 'internal scratch']
  %s0 = inlined_call_operand.vmem [shape: f32[8,192], index: 0, kind: input, shape index: {}]
  %s1 = inlined_call_operand.vmem [shape: f32[192,64], index: 1, kind: input, shape index: {}]
  %s2 = inlined_call_operand.vmem [shape: f32[80,128], index: 2, kind: input, shape index: {}]
  %s3 = inlined_call_operand.vmem [shape: s32[8,1], index: 3, kind: input, shape index: {}]
  %s4 = inlined_call_operand.vmem [shape: f32[8,6], index: 4, kind: output, shape index: {}]
  %s5 = sld [smem:[#allocation0]]
  $region26: #{classifier1_forward.1} parent=0
    _
  %s7 = ssub.s32 1, %s5
  %s8 = scalar_select 0, %s7, %s5
  // Predicated region
  $region2: #{classifier1_forward.1} parent=0 // pred_check
    _
  $region3: #{classifier1_forward.1} parent=0 // pred_check_branch
    %10 = sbr.rel (0) target = $region5
  $region4: #{classifier1_forward.1} parent=0 // pred_region
    _
  $region5: #{classifier1_forward.1} parent=0 // pred_fallthru
    _
  // Predicated region
  $region6: #{classifier1_forward.1} parent=0 // pred_check
    _
  $region7: #{classifier1_forward.1} parent=0 // pred_check_branch
    %12 = sbr.rel (0) target = $region9
  $region8: #{classifier1_forward.1} parent=0 // pred_region
    _
  $region9: #{classifier1_forward.1} parent=0 // pred_fallthru
    _
  // Predicated region
  $region10: #{classifier1_forward.1} parent=0 // pred_check
    _
  $region11: #{classifier1_forward.1} parent=0 // pred_check_branch
    %14 = sbr.rel (0) target = $region13
  $region12: #{classifier1_forward.1} parent=0 // pred_region
    _
  $region13: #{classifier1_forward.1} parent=0 // pred_fallthru
    _
  // Predicated region
  $region14: #{classifier1_forward.1} parent=0 // pred_check
    _
  $region15: #{classifier1_forward.1} parent=0 // pred_check_branch
    %16 = sbr.rel (0) target = $region17
  $region16: #{classifier1_forward.1} parent=0 // pred_region
    _
  $region17: #{classifier1_forward.1} parent=0 // pred_fallthru
    _
  %v17 = vld [vmem:[%s0] sm:$0xff]
  %v18 = vld [vmem:[%s0 + $0x8] sm:$0xff]
  %v19 = vld [vmem:[%s2 + $0x48] sm:$0x1]
  %v20 = vld [vmem:[%s2 + $0x49] sm:$0x1]
  %v21 = vld [vmem:[%s2 + $0x4a] sm:$0x1]
  %v22 = vld [vmem:[%s1] sm:$0xff]
  %v23 = vld [vmem:[%s1 + $0x8] sm:$0xff]
  %v24 = vld [vmem:[%s1 + $0x10] sm:$0xff]
  %v25 = vld [vmem:[%s1 + $0x18] sm:$0xff]
  %v26 = vld [vmem:[%s1 + $0x20] sm:$0xff]
  %v27 = vld [vmem:[%s1 + $0x28] sm:$0xff]
  %v28 = vld [vmem:[%s1 + $0x30] sm:$0xff]
  %v29 = vld [vmem:[%s1 + $0x38] sm:$0xff]
  %v30 = vld [vmem:[%s1 + $0x40] sm:$0xff]
  %v31 = vld [vmem:[%s1 + $0x48] sm:$0xff]
  %v32 = vld [vmem:[%s1 + $0x50] sm:$0xff]
  %v33 = vld [vmem:[%s1 + $0x58] sm:$0xff]
  %v34 = vld [vmem:[%s1 + $0x60] sm:$0xff]
  %v35 = vld [vmem:[%s1 + $0x68] sm:$0xff]
  %v36 = vld [vmem:[%s1 + $0x70] sm:$0xff]
  %v37 = vld [vmem:[%s1 + $0x78] sm:$0xff]
  %v38 = vld [vmem:[%s1 + $0x80] sm:$0xff]
  %v39 = vld [vmem:[%s1 + $0x88] sm:$0xff]
  %v40 = vld [vmem:[%s1 + $0x90] sm:$0xff]
  %v41 = vld [vmem:[%s1 + $0x98] sm:$0xff]
  %v42 = vld [vmem:[%s1 + $0xa0] sm:$0xff]
  %v43 = vld [vmem:[%s1 + $0xa8] sm:$0xff]
  %v44 = vld [vmem:[%s1 + $0xb0] sm:$0xff]
  %v45 = vld [vmem:[%s1 + $0xb8] sm:$0xff]
  %v46 = vlaneseq
  %v47 = vshrl.u32 %v46, 7
  %v48 = vsub.s32 0, %v47
  %v49 = vrot.slane %v19, %v48
  %vm50 = vcmask 523264
  %v52 = vsel %vm50, %v18, 0
  %54 = vmatprep.subr.mxu0 0.0
  %55 = vmatpush1.msra.mxu0 %v22
  %56 = vmatprep.subr.mxu0 0.0
  %57 = vmatpush1.msra.mxu0 %v23
  %58 = vmatprep.subr.mxu0 0.0
  %59 = vmatpush1.msra.mxu0 %v24
  %60 = vmatprep.subr.mxu0 0.0
  %61 = vmatpush1.msra.mxu0 %v25
  %62 = vmatprep.subr.mxu0 0.0
  %63 = vmatpush1.msra.mxu0 %v26
  %64 = vmatprep.subr.mxu0 0.0
  %65 = vmatpush1.msra.mxu0 %v27
  %66 = vmatprep.subr.mxu0 0.0
  %67 = vmatpush1.msra.mxu0 %v28
  %68 = vmatprep.subr.mxu0 0.0
  %69 = vmatpush1.msra.mxu0 %v29
  %70 = vmatprep.subr.mxu0 0.0
  %71 = vmatpush1.msra.mxu0 %v30
  %72 = vmatprep.subr.mxu0 0.0
  %73 = vmatpush1.msra.mxu0 %v31
  %74 = vmatprep.subr.mxu0 0.0
  %75 = vmatpush1.msra.mxu0 %v32
  %76 = vmatprep.subr.mxu0 0.0
  %77 = vmatpush1.msra.mxu0 %v33
  %78 = vmatprep.subr.mxu0 0.0
  %79 = vmatpush1.msra.mxu0 %v34
  %80 = vmatprep.subr.mxu0 0.0
  %81 = vmatpush1.msra.mxu0 %v35
  %82 = vmatprep.subr.mxu0 0.0
  %83 = vmatpush1.msra.mxu0 %v36
  %84 = vmatprep.subr.mxu0 0.0
  %85 = vmatpush1.msra.mxu0 %v37
  %86 = vmatprep.subr.mxu0 0.0
  %87 = vmatpush1.msra.mxu0 %v38
  %88 = vmatprep.subr.mxu0 0.0
  %89 = vmatpush1.msra.mxu0 %v39
  %90 = vmatprep.subr.mxu0 0.0
  %91 = vmatpush1.msra.mxu0 %v40
  %92 = vmatprep.subr.mxu0 0.0
  %93 = vmatpush1.msra.mxu0 %v41
  %94 = vmatprep.subr.mxu0 0.0
  %95 = vmatpush1.msra.mxu0 %v42
  %96 = vmatprep.subr.mxu0 0.0
  %97 = vmatpush1.msra.mxu0 %v43
  %98 = vmatprep.subr.mxu0 0.0
  %99 = vmatpush1.msra.mxu0 %v44
  %100 = vmatprep.subr.mxu0 0.0
  %101 = vmatpush1.msra.mxu0 %v45
  %102 = vmatprep.subr.mxu0 0.0
  %103 = vmatpush1.msra.mxu0 0.0
  %104 = vmatprep.subr.mxu0 0.0
  %105 = vmatpush1.msra.mxu0 0.0
  %106 = vmatprep.subr.mxu0 0.0
  %107 = vmatpush1.msra.mxu0 0.0
  %108 = vmatprep.subr.mxu0 0.0
  %109 = vmatpush1.msra.mxu0 0.0
  %110 = vmatprep.subr.mxu0 0.0
  %111 = vmatpush1.msra.mxu0 0.0
  %112 = vmatprep.subr.mxu0 0.0
  %113 = vmatpush1.msra.mxu0 0.0
  %114 = vmatprep.subr.mxu0 0.0
  %115 = vmatpush1.msra.mxu0 0.0
  %116 = vmatprep.subr.mxu0 0.0
  %117 = vmatpush1.msra.mxu0 0.0
  %118 = vmatprep.mubr.f32.mxu0 %v52
  %119 = vmatmul.mubr.f32.gmra.mrb[0].mxu0 %v17
  %v120 = vpop.f32.mrb[0].mxu0
  %v121 = vadd.f32 %v49, %v120
  %v122 = vpop.f32.mrb[0].mxu0
  %123 = vdwg.mxu0
  %v124 = vmax.f32 %v121, 0.0
  %v125 = vld [vmem:[%s2] sm:$0xff]
  %v126 = vld [vmem:[%s2 + $0x8] sm:$0xff]
  %v127 = vld [vmem:[%s2 + $0x10] sm:$0xff]
  %v128 = vld [vmem:[%s2 + $0x18] sm:$0xff]
  %v129 = vld [vmem:[%s2 + $0x20] sm:$0xff]
  %v130 = vld [vmem:[%s2 + $0x28] sm:$0xff]
  %v131 = vld [vmem:[%s2 + $0x30] sm:$0xff]
  %v132 = vld [vmem:[%s2 + $0x38] sm:$0xff]
  %v133 = vlaneseq
  %v134 = vshrl.u32 %v133, 7
  %v135 = vsub.s32 0, %v134
  %v136 = vrot.slane %v20, %v135
  %v138 = vsel %vm50, %v124, 0
  %140 = vmatprep.subr.mxu0 0.0
  %141 = vmatpush1.msra.mxu0 %v125
  %142 = vmatprep.subr.mxu0 0.0
  %143 = vmatpush1.msra.mxu0 %v126
  %144 = vmatprep.subr.mxu0 0.0
  %145 = vmatpush1.msra.mxu0 %v127
  %146 = vmatprep.subr.mxu0 0.0
  %147 = vmatpush1.msra.mxu0 %v128
  %148 = vmatprep.subr.mxu0 0.0
  %149 = vmatpush1.msra.mxu0 %v129
  %150 = vmatprep.subr.mxu0 0.0
  %151 = vmatpush1.msra.mxu0 %v130
  %152 = vmatprep.subr.mxu0 0.0
  %153 = vmatpush1.msra.mxu0 %v131
  %154 = vmatprep.subr.mxu0 0.0
  %155 = vmatpush1.msra.mxu0 %v132
  %156 = vmatprep.subr.mxu0 0.0
  %157 = vmatpush1.msra.mxu0 0.0
  %158 = vmatprep.subr.mxu0 0.0
  %159 = vmatpush1.msra.mxu0 0.0
  %160 = vmatprep.subr.mxu0 0.0
  %161 = vmatpush1.msra.mxu0 0.0
  %162 = vmatprep.subr.mxu0 0.0
  %163 = vmatpush1.msra.mxu0 0.0
  %164 = vmatprep.subr.mxu0 0.0
  %165 = vmatpush1.msra.mxu0 0.0
  %166 = vmatprep.subr.mxu0 0.0
  %167 = vmatpush1.msra.mxu0 0.0
  %168 = vmatprep.subr.mxu0 0.0
  %169 = vmatpush1.msra.mxu0 0.0
  %170 = vmatprep.subr.mxu0 0.0
  %171 = vmatpush1.msra.mxu0 0.0
  %172 = vmatprep.subr.mxu0 0.0
  %173 = vmatpush1.msra.mxu0 0.0
  %174 = vmatprep.subr.mxu0 0.0
  %175 = vmatpush1.msra.mxu0 0.0
  %176 = vmatprep.subr.mxu0 0.0
  %177 = vmatpush1.msra.mxu0 0.0
  %178 = vmatprep.subr.mxu0 0.0
  %179 = vmatpush1.msra.mxu0 0.0
  %180 = vmatprep.subr.mxu0 0.0
  %181 = vmatpush1.msra.mxu0 0.0
  %182 = vmatprep.subr.mxu0 0.0
  %183 = vmatpush1.msra.mxu0 0.0
  %184 = vmatprep.subr.mxu0 0.0
  %185 = vmatpush1.msra.mxu0 0.0
  %186 = vmatprep.subr.mxu0 0.0
  %187 = vmatpush1.msra.mxu0 0.0
  %188 = vmatprep.subr.mxu0 0.0
  %189 = vmatpush1.msra.mxu0 0.0
  %190 = vmatprep.subr.mxu0 0.0
  %191 = vmatpush1.msra.mxu0 0.0
  %192 = vmatprep.subr.mxu0 0.0
  %193 = vmatpush1.msra.mxu0 0.0
  %194 = vmatprep.subr.mxu0 0.0
  %195 = vmatpush1.msra.mxu0 0.0
  %196 = vmatprep.subr.mxu0 0.0
  %197 = vmatpush1.msra.mxu0 0.0
  %198 = vmatprep.subr.mxu0 0.0
  %199 = vmatpush1.msra.mxu0 0.0
  %200 = vmatprep.subr.mxu0 0.0
  %201 = vmatpush1.msra.mxu0 0.0
  %202 = vmatprep.subr.mxu0 0.0
  %203 = vmatpush1.msra.mxu0 0.0
  %204 = vmatprep.mubr.f32.mxu0 0.0
  %205 = vmatmul.mubr.f32.gmra.mrb[0].mxu0 %v138
  %v206 = vpop.f32.mrb[0].mxu0
  %v207 = vadd.f32 %v136, %v206
  %v208 = vpop.f32.mrb[0].mxu0
  %209 = vdwg.mxu0
  %v210 = vmax.f32 %v207, 0.0
  %v211 = vld [vmem:[%s2 + $0x40] sm:$0xff]
  %v212 = vlaneseq
  %v213 = vshrl.u32 %v212, 7
  %v214 = vsub.s32 0, %v213
  %v215 = vrot.slane %v21, %v214
  %217 = vset.pattern.permute.xlu0 0
  %218 = vperm.xlu0 %217, %v210
  %v219 = vpop.permute.xlu0 %218
  %v221 = vlaneseq
  %v222 = vshrl.u32 %v221, 7
  %v223 = vsub.s32 0, %v222
  %v224 = vrot.slane %v211, %v223
  %v225 = vmul.f32 %v219, %v224
  %v226 = vadd.f32 %v215, %v225
  %227 = vset.pattern.permute.xlu0 1
  %228 = vperm.xlu0 %227, %v210
  %v229 = vpop.permute.xlu0 %228
  %v231 = vlaneseq
  %v232 = vshrl.u32 %v231, 7
  %v233 = vsub.s32 1, %v232
  %v234 = vrot.slane %v211, %v233
  %v235 = vmul.f32 %v229, %v234
  %v236 = vadd.f32 %v226, %v235
  %237 = vset.pattern.permute.xlu0 2
  %238 = vperm.xlu0 %237, %v210
  %v239 = vpop.permute.xlu0 %238
  %v241 = vlaneseq
  %v242 = vshrl.u32 %v241, 7
  %v243 = vsub.s32 2, %v242
  %v244 = vrot.slane %v211, %v243
  %v245 = vmul.f32 %v239, %v244
  %v246 = vadd.f32 %v236, %v245
  %247 = vset.pattern.permute.xlu0 3
  %248 = vperm.xlu0 %247, %v210
  %v249 = vpop.permute.xlu0 %248
  %v251 = vlaneseq
  %v252 = vshrl.u32 %v251, 7
  %v253 = vsub.s32 3, %v252
  %v254 = vrot.slane %v211, %v253
  %v255 = vmul.f32 %v249, %v254
  %v256 = vadd.f32 %v246, %v255
  %257 = vset.pattern.permute.xlu0 4
  %258 = vperm.xlu0 %257, %v210
  %v259 = vpop.permute.xlu0 %258
  %v261 = vlaneseq
  %v262 = vshrl.u32 %v261, 7
  %v263 = vsub.s32 4, %v262
  %v264 = vrot.slane %v211, %v263
  %v265 = vmul.f32 %v259, %v264
  %v266 = vadd.f32 %v256, %v265
  %267 = vset.pattern.permute.xlu0 5
  %268 = vperm.xlu0 %267, %v210
  %v269 = vpop.permute.xlu0 %268
  %v271 = vlaneseq
  %v272 = vshrl.u32 %v271, 7
  %v273 = vsub.s32 5, %v272
  %v274 = vrot.slane %v211, %v273
  %v275 = vmul.f32 %v269, %v274
  %v276 = vadd.f32 %v266, %v275
  %277 = vset.pattern.permute.xlu0 6
  %278 = vperm.xlu0 %277, %v210
  %v279 = vpop.permute.xlu0 %278
  %v281 = vlaneseq
  %v282 = vshrl.u32 %v281, 7
  %v283 = vsub.s32 6, %v282
  %v284 = vrot.slane %v211, %v283
  %v285 = vmul.f32 %v279, %v284
  %v286 = vadd.f32 %v276, %v285
  %287 = vset.pattern.permute.xlu0 7
  %288 = vperm.xlu0 %287, %v210
  %v289 = vpop.permute.xlu0 %288
  %v291 = vlaneseq
  %v292 = vshrl.u32 %v291, 7
  %v293 = vsub.s32 7, %v292
  %v294 = vrot.slane %v211, %v293
  %v295 = vmul.f32 %v289, %v294
  %v296 = vadd.f32 %v286, %v295
  %vm297 = vcmask 31744
  %v298 = vsel %vm297, %v296, -inf
  %299 = vmax.xlane.f32.xlu0 %v298
  %v300 = vpop.xlane.xlu0 %299
  %v301 = vsub.f32 %v296, %v300
  %v302 = vmul.f32 %v301, 1.442695
  %v303 = vpow.pop %v302
  %v304 = vsel %vm297, %v303, 0.0
  %305 = vadd.xlane.f32.xlu0 %v304
  %v306 = vpop.xlane.xlu0 %305
  %v307 = vlog2.pop %v306
  %v308 = vmul.f32 %v307, 0.6931472
  %v309 = vsub.f32 %v301, %v308
  %v310 = vlaneseq
  %v311 = vand.u32 %v310, 127
  %v312 = vld [vmem:[%s3] sm:$0xff]
  %313 = vset.pattern.permute.xlu0 0
  %314 = vperm.xlu0 %313, %v312
  %v315 = vpop.permute.xlu0 %314
  %vm316 = vcmp.eq.s32.totalorder %v311, %v315
  %v317 = vsel %vm316, 1, 0
  %v318 = vcvt.s32.f32 %v317
  %v319 = vmul.f32 %v318, %v309
  %v320 = vsel %vm297, %v319, 0.0
  %321 = vadd.xlane.f32.xlu0 %v320
  %v322 = vpop.xlane.xlu0 %321
  %v323 = vsub.f32 0.0, %v322
  %v324 = vrot.slane %v323, 4
  %v325 = vadd.f32 %v323, %v324
  %v326 = vrot.slane %v325, 2
  %v327 = vadd.f32 %v325, %v326
  %v328 = vrot.slane %v327, 1
  %v329 = vadd.f32 %v327, %v328
  %v330 = vmul.f32 %v329, 0.125
  %v331 = vcvt.s32.f32 %v311
  %vm332 = vcmp.eq.f32.partialorder %v296, %v300
  %v333 = vsel %vm332, %v331, 4.0
  %v334 = vsel %vm297, %v333, inf
  %335 = vmin.xlane.f32.xlu0 %v334
  %v336 = vpop.xlane.xlu0 %335
  %337 = vst.msk [vmem:[%s4] sm:$0xff] %vm297, %v296
  %vm338 = vcmask 39968
  %339 = vst.msk [vmem:[%s4] sm:$0xff] %vm338, %v330
  %vm340 = vcmask 48168
  %341 = vst.msk [vmem:[%s4] sm:$0xff] %vm340, %v336
  // Predicated region
  $region18: #{classifier1_forward.1} parent=0 // pred_check
    _
  $region19: #{classifier1_forward.1} parent=0 // pred_check_branch
    %343 = sbr.rel (0) target = $region21
  $region20: #{classifier1_forward.1} parent=0 // pred_region
    _
  $region21: #{classifier1_forward.1} parent=0 // pred_fallthru
    _
  // Predicated region
  $region22: #{classifier1_forward.1} parent=0 // pred_check
    _
  $region23: #{classifier1_forward.1} parent=0 // pred_check_branch
    %345 = sbr.rel (0) target = $region25
  $region24: #{classifier1_forward.1} parent=0 // pred_region
    _
  $region25: #{classifier1_forward.1} parent=0 // pred_fallthru
    _

</llo_original>
